<compile_context>
chip_gen: v6e
topology: v6e:2x2x1
jax: 0.10.0
libtpu: 0.0.40
codegen_flags: <defaults>
</compile_context>

<pallas_src>
import jax
import jax.numpy as jnp
from jax.experimental import pallas as pl
from jax.experimental.pallas import tpu as pltpu

IN_CHANNELS = 4      # in_channels
FEATURE_DIM = 32     # feature_dim (== GRU hidden size == GRU input size)
N_CLASSES = 4        # n_classes
NUM_LAYERS = 2       # num_layers_decoder
OUT_LANES = 128      # lane-dense output width (wrapper slices first N_CLASSES)

# ---- packed-slab layout (host-side packing, static offsets in the kernel) ----
W_COLS = 256                      # lane width of both slabs (multiple of 128)
EW1_R = 0                         # rows 0:4      embedding Linear 1 (C, H)
EW2_R = 8                         # rows 8:40     embedding Linear 2 (H, H)
GRU_R = (40, 104)                 # rows 40:104 / 104:168  block-diag GRU (2H, 256) per layer
FC_R = 168                        # rows 168:200  fc (H, n_classes)
W_ROWS = 200                      # multiple of 8


def pack_params(params):
    """Pack the 12 small parameter tensors into two lane-dense f32 slabs."""
    H, C, NC, L = FEATURE_DIM, IN_CHANNELS, N_CLASSES, NUM_LAYERS
    W = jnp.zeros((W_ROWS, W_COLS), jnp.float32)
    W = W.at[EW1_R:EW1_R + C, 0:H].set(params["ew1"])
    W = W.at[EW2_R:EW2_R + H, 0:H].set(params["ew2"])
    for l in range(L):
        r = GRU_R[l]
        # block-diagonal: rows 0:H act on layer_in -> gi (lanes 0:3H)
        #                 rows H:2H act on h_prev  -> gh (lanes 128:128+3H)
        W = W.at[r:r + H, 0:3 * H].set(params["wih"][l])
        W = W.at[r + H:r + 2 * H, 128:128 + 3 * H].set(params["whh"][l])
    W = W.at[FC_R:FC_R + H, 0:NC].set(params["fcw"])

    B = jnp.zeros((8, W_COLS), jnp.float32)
    B = B.at[0, 0:H].set(params["eb1"][0])
    B = B.at[1, 0:H].set(params["eb2"][0])
    for l in range(L):
        B = B.at[2 + l, 0:3 * H].set(params["bih"][l, 0])
        B = B.at[2 + l, 128:128 + 3 * H].set(params["bhh"][l, 0])
    B = B.at[4, 0:NC].set(params["fcb"][0])
    return W, B


def decoder_rnn_kernel(xs_ref, w_ref, b_ref, h0_ref, out_ref, hout_ref):
    H, C, NC = FEATURE_DIM, IN_CHANNELS, N_CLASSES
    T = xs_ref.shape[0]

    # ---- loop-invariant loads: every parameter slice is read exactly once ----
    ew1 = w_ref[EW1_R:EW1_R + C, 0:H]                                       # (C, H)
    ew2 = w_ref[EW2_R:EW2_R + H, 0:H]                                       # (H, H)
    eb1 = b_ref[0:1, 0:H]
    eb2 = b_ref[1:2, 0:H]
    wcat = [w_ref[GRU_R[l]:GRU_R[l] + 2 * H, :] for l in range(NUM_LAYERS)]  # (2H, 256) block-diag
    bcat = [b_ref[2 + l:3 + l, :] for l in range(NUM_LAYERS)]                # (1, 256) [bih | bhh]
    fcw = w_ref[FC_R:FC_R + H, 0:NC]                                         # (H, NC)
    fcb = b_ref[4:5, 0:NC]                                                   # (1, NC)

    # ---- hoisted embedding MLP: batched over all T timesteps (MXU M = T) ----
    x_all = xs_ref[...]                                                      # (T, C)
    h1 = jnp.maximum(
        jnp.dot(x_all, ew1, preferred_element_type=jnp.float32) + eb1, 0.0)  # (T, H)
    emb = jnp.dot(h1, ew2, preferred_element_type=jnp.float32) + eb2         # (T, H)

    # ---- recurrent core: statically unrolled, hidden carried in vregs ----
    h = [h0_ref[l] for l in range(NUM_LAYERS)]                               # each (1, H)
    outs = []
    for t in range(T):                                                       # static unroll
        layer_in = emb[t:t + 1, :]                                           # (1, H)
        for l in range(NUM_LAYERS):                                          # static unroll
            xh = jnp.concatenate([layer_in, h[l]], axis=1)                   # (1, 2H)
            g = jnp.dot(xh, wcat[l], preferred_element_type=jnp.float32) + bcat[l]  # (1, 256)
            gi = g[:, 0:3 * H]                                               # lanes 0:96
            gh = g[:, 128:128 + 3 * H]                                       # lanes 128:224
            rz = jax.nn.sigmoid(gi[:, 0:2 * H] + gh[:, 0:2 * H])             # one sigmoid, r||z
            r = rz[:, 0:H]
            z = rz[:, H:2 * H]
            n = jnp.tanh(gi[:, 2 * H:3 * H] + r * gh[:, 2 * H:3 * H])
            h_new = (1.0 - z) * n + z * h[l]                                 # (1, H)
            h[l] = h_new
            layer_in = h_new
        outs.append(layer_in)
    # TODO(synk): nn.GRU dropout=0.3 applies only between layers in training mode;
    # this kernel implements eval/inference semantics, so it is intentionally omitted.

    # ---- hoisted fc + log_softmax, ONE lane-dense (T, 128) writeback ----
    hlast = jnp.concatenate(outs, axis=0)                                    # (T, H)
    logits = jnp.dot(hlast, fcw, preferred_element_type=jnp.float32) + fcb   # (T, NC)
    m = jnp.max(logits, axis=1, keepdims=True)
    s = logits - m
    lse = jnp.log(jnp.sum(jnp.exp(s), axis=1, keepdims=True))
    logp = s - lse                                                           # (T, NC)
    out_ref[...] = jnp.concatenate(
        [logp, jnp.zeros((T, OUT_LANES - NC), jnp.float32)], axis=1)

    # ---- final hidden written once ----
    for l in range(NUM_LAYERS):
        hout_ref[l] = h[l]


@jax.jit
def decoder_rnn_decode(xs, w_slab, b_slab, hidden):
    """Fused T-step decode: xs (T, 1, C), hidden (L, 1, H) -> (T, NC), (L, 1, H)."""
    T = xs.shape[0]
    xs2 = xs.reshape(T, IN_CHANNELS).astype(jnp.float32)
    vmem = pltpu.MemorySpace.VMEM
    out, h_out = pl.pallas_call(
        decoder_rnn_kernel,
        out_shape=(
            jax.ShapeDtypeStruct((T, OUT_LANES), jnp.float32),
            jax.ShapeDtypeStruct((NUM_LAYERS, 1, FEATURE_DIM), jnp.float32),
        ),
        in_specs=[
            pl.BlockSpec(memory_space=vmem),   # xs (T, C) resident
            pl.BlockSpec(memory_space=vmem),   # weight slab (200, 256)
            pl.BlockSpec(memory_space=vmem),   # bias slab (8, 256)
            pl.BlockSpec(memory_space=vmem),   # initial hidden (L, 1, H)
        ],
        out_specs=(
            pl.BlockSpec(memory_space=vmem),   # log-probs (T, 128) lane-dense
            pl.BlockSpec(memory_space=vmem),   # final hidden (L, 1, H)
        ),
    )(xs2, w_slab, b_slab, hidden)
    return out[:, :N_CLASSES], h_out


def decoder_rnn_forward(x, w_slab, b_slab, hidden):
    """Original module semantics: one step. x (1, C), hidden (L, 1, H)."""
    logp, h_out = decoder_rnn_decode(x[None], w_slab, b_slab, hidden)
    return logp, h_out                                                       # (1, NC), (L, 1, H)


def reference_forward(x, params, hidden):
    """Pure-JAX reference mirroring the PyTorch forward (eval mode)."""
    H = FEATURE_DIM
    h = jnp.maximum(x @ params["ew1"] + params["eb1"], 0.0)
    emb = h @ params["ew2"] + params["eb2"]
    layer_in = emb
    new_h = []
    for l in range(NUM_LAYERS):
        h_prev = hidden[l]
        gi = layer_in @ params["wih"][l] + params["bih"][l]
        gh = h_prev @ params["whh"][l] + params["bhh"][l]
        r = jax.nn.sigmoid(gi[:, 0:H] + gh[:, 0:H])
        z = jax.nn.sigmoid(gi[:, H:2 * H] + gh[:, H:2 * H])
        n = jnp.tanh(gi[:, 2 * H:3 * H] + r * gh[:, 2 * H:3 * H])
        h_new = (1.0 - z) * n + z * h_prev
        new_h.append(h_new)
        layer_in = h_new
    logits = layer_in @ params["fcw"] + params["fcb"]
    out = jax.nn.log_softmax(logits, axis=1)
    return out, jnp.stack(new_h, axis=0)


def init_params(key):
    ks = jax.random.split(key, 12)
    H, C, L, NC = FEATURE_DIM, IN_CHANNELS, NUM_LAYERS, N_CLASSES
    u = lambda k, shape, scale: jax.random.uniform(k, shape, jnp.float32, -scale, scale)
    return {
        # embedding: Linear(C,H) -> ReLU -> Linear(H,H), weights stored (in, out)
        "ew1": u(ks[0], (C, H), 1.0 / jnp.sqrt(C)),
        "eb1": u(ks[1], (1, H), 1.0 / jnp.sqrt(C)),
        "ew2": u(ks[2], (H, H), 1.0 / jnp.sqrt(H)),
        "eb2": u(ks[3], (1, H), 1.0 / jnp.sqrt(H)),
        # GRU: per layer w_ih/w_hh -> (H, 3H) transposed, gate order [r, z, n]
        "wih": u(ks[4], (L, H, 3 * H), 1.0 / jnp.sqrt(H)),
        "whh": u(ks[5], (L, H, 3 * H), 1.0 / jnp.sqrt(H)),
        "bih": u(ks[6], (L, 1, 3 * H), 1.0 / jnp.sqrt(H)),
        "bhh": u(ks[7], (L, 1, 3 * H), 1.0 / jnp.sqrt(H)),
        # fc: Linear(H, n_classes)
        "fcw": u(ks[8], (H, NC), 1.0 / jnp.sqrt(H)),
        "fcb": u(ks[9], (1, NC), 1.0 / jnp.sqrt(H)),
    }


if __name__ == "__main__":
    key = jax.random.PRNGKey(0)
    k_param, k_x, k_xs = jax.random.split(key, 3)
    params = init_params(k_param)
    w_slab, b_slab = pack_params(params)

    hidden0 = jnp.zeros((NUM_LAYERS, 1, FEATURE_DIM), jnp.float32)

    # --- single-step: exactly the PyTorch DecoderRNN.forward(input, hidden) ---
    x = jax.random.normal(k_x, (1, IN_CHANNELS), jnp.float32)
    out, new_hidden = decoder_rnn_forward(x, w_slab, b_slab, hidden0)
    jax.block_until_ready((out, new_hidden))
    ref_out, ref_hidden = reference_forward(x, params, hidden0)
    assert out.shape == (1, N_CLASSES)
    assert new_hidden.shape == (NUM_LAYERS, 1, FEATURE_DIM)
    assert jnp.allclose(out, ref_out, atol=1e-5, rtol=1e-5)
    assert jnp.allclose(new_hidden, ref_hidden, atol=1e-5, rtol=1e-5)

    # --- fused multi-step decode: all T steps in ONE gridless pallas_call ---
    T = 8
    xs = jax.random.normal(k_xs, (T, 1, IN_CHANNELS), jnp.float32)
    outs, h_T = decoder_rnn_decode(xs, w_slab, b_slab, hidden0)
    jax.block_until_ready((outs, h_T))

    h_ref = hidden0
    ref_outs = []
    for ti in range(T):
        o_t, h_ref = reference_forward(xs[ti], params, h_ref)
        ref_outs.append(o_t)
    ref_outs = jnp.concatenate(ref_outs, axis=0)
    assert outs.shape == (T, N_CLASSES)
    assert h_T.shape == (NUM_LAYERS, 1, FEATURE_DIM)
    assert jnp.allclose(outs, ref_outs, atol=1e-5, rtol=1e-5)
    assert jnp.allclose(h_T, h_ref, atol=1e-5, rtol=1e-5)

    print("KERNEL_OK")
</pallas_src>

<mosaic_0001>
module attributes {stable_mosaic.version = 11 : i64} {
  func.func @decoder_rnn_kernel(%arg0: memref<1x4xf32, #tpu.memory_space<vmem>>, %arg1: memref<200x256xf32, #tpu.memory_space<vmem>>, %arg2: memref<8x256xf32, #tpu.memory_space<vmem>>, %arg3: memref<2x1x32xf32, #tpu.memory_space<vmem>>, %arg4: memref<1x128xf32, #tpu.memory_space<vmem>>, %arg5: memref<2x1x32xf32, #tpu.memory_space<vmem>>) attributes {dimension_semantics = [], scalar_prefetch = 0 : i64, scratch_operands = 0 : i64, tpu.core_type = #tpu.core_type<tc>} {
    %c0 = arith.constant 0 : index
    %c0_0 = arith.constant 0 : index
    %0 = vector.load %arg1[%c0, %c0_0] : memref<200x256xf32, #tpu.memory_space<vmem>>, vector<4x32xf32>
    %c8 = arith.constant 8 : index
    %c0_1 = arith.constant 0 : index
    %1 = vector.load %arg1[%c8, %c0_1] : memref<200x256xf32, #tpu.memory_space<vmem>>, vector<32x32xf32>
    %c0_2 = arith.constant 0 : index
    %c0_3 = arith.constant 0 : index
    %2 = vector.load %arg2[%c0_2, %c0_3] : memref<8x256xf32, #tpu.memory_space<vmem>>, vector<1x32xf32>
    %c1 = arith.constant 1 : index
    %c0_4 = arith.constant 0 : index
    %3 = vector.load %arg2[%c1, %c0_4] : memref<8x256xf32, #tpu.memory_space<vmem>>, vector<1x32xf32>
    %c40 = arith.constant 40 : index
    %c0_5 = arith.constant 0 : index
    %4 = vector.load %arg1[%c40, %c0_5] : memref<200x256xf32, #tpu.memory_space<vmem>>, vector<64x256xf32>
    %c104 = arith.constant 104 : index
    %c0_6 = arith.constant 0 : index
    %5 = vector.load %arg1[%c104, %c0_6] : memref<200x256xf32, #tpu.memory_space<vmem>>, vector<64x256xf32>
    %c2 = arith.constant 2 : index
    %c0_7 = arith.constant 0 : index
    %6 = vector.load %arg2[%c2, %c0_7] : memref<8x256xf32, #tpu.memory_space<vmem>>, vector<1x256xf32>
    %c3 = arith.constant 3 : index
    %c0_8 = arith.constant 0 : index
    %7 = vector.load %arg2[%c3, %c0_8] : memref<8x256xf32, #tpu.memory_space<vmem>>, vector<1x256xf32>
    %c168 = arith.constant 168 : index
    %c0_9 = arith.constant 0 : index
    %8 = vector.load %arg1[%c168, %c0_9] : memref<200x256xf32, #tpu.memory_space<vmem>>, vector<32x4xf32>
    %c4 = arith.constant 4 : index
    %c0_10 = arith.constant 0 : index
    %9 = vector.load %arg2[%c4, %c0_10] : memref<8x256xf32, #tpu.memory_space<vmem>>, vector<1x4xf32>
    %c0_11 = arith.constant 0 : index
    %c0_12 = arith.constant 0 : index
    %10 = vector.load %arg0[%c0_11, %c0_12] : memref<1x4xf32, #tpu.memory_space<vmem>>, vector<1x4xf32>
    %cst = arith.constant dense<0.000000e+00> : vector<1x32xf32>
    %11 = tpu.matmul %10, %0, %cst {dimension_numbers = #tpu.dot_dimension_numbers<[1], [0], [0], [1], [0, 0, 1, 1], [], []>} : vector<1x4xf32>, vector<4x32xf32>, vector<1x32xf32> -> vector<1x32xf32>
    %12 = arith.addf %11, %2 : vector<1x32xf32>
    %cst_13 = arith.constant 0.000000e+00 : f32
    %13 = vector.broadcast %cst_13 : f32 to vector<1x32xf32>
    %14 = arith.maximumf %12, %13 : vector<1x32xf32>
    %cst_14 = arith.constant dense<0.000000e+00> : vector<1x32xf32>
    %15 = tpu.matmul %14, %1, %cst_14 {dimension_numbers = #tpu.dot_dimension_numbers<[1], [0], [0], [1], [0, 0, 1, 1], [], []>} : vector<1x32xf32>, vector<32x32xf32>, vector<1x32xf32> -> vector<1x32xf32>
    %16 = arith.addf %15, %3 : vector<1x32xf32>
    %c0_15 = arith.constant 0 : index
    %c0_16 = arith.constant 0 : index
    %c0_17 = arith.constant 0 : index
    %17 = vector.load %arg3[%c0_15, %c0_16, %c0_17] : memref<2x1x32xf32, #tpu.memory_space<vmem>>, vector<1x1x32xf32>
    %18 = vector.shape_cast %17 : vector<1x1x32xf32> to vector<1x32xf32>
    %c1_18 = arith.constant 1 : index
    %c0_19 = arith.constant 0 : index
    %c0_20 = arith.constant 0 : index
    %19 = vector.load %arg3[%c1_18, %c0_19, %c0_20] : memref<2x1x32xf32, #tpu.memory_space<vmem>>, vector<1x1x32xf32>
    %20 = vector.shape_cast %19 : vector<1x1x32xf32> to vector<1x32xf32>
    %21 = tpu.concatenate %16, %18 in 1 : vector<1x32xf32>, vector<1x32xf32> -> vector<1x64xf32>
    %cst_21 = arith.constant dense<0.000000e+00> : vector<1x256xf32>
    %22 = tpu.matmul %21, %4, %cst_21 {dimension_numbers = #tpu.dot_dimension_numbers<[1], [0], [0], [1], [0, 0, 1, 1], [], []>} : vector<1x64xf32>, vector<64x256xf32>, vector<1x256xf32> -> vector<1x256xf32>
    %23 = arith.addf %22, %6 : vector<1x256xf32>
    %24 = vector.extract_strided_slice %23 {offsets = [0, 0], sizes = [1, 96], strides = [1, 1]} : vector<1x256xf32> to vector<1x96xf32>
    %25 = vector.extract_strided_slice %23 {offsets = [0, 128], sizes = [1, 96], strides = [1, 1]} : vector<1x256xf32> to vector<1x96xf32>
    %26 = vector.extract_strided_slice %24 {offsets = [0, 0], sizes = [1, 64], strides = [1, 1]} : vector<1x96xf32> to vector<1x64xf32>
    %27 = vector.extract_strided_slice %25 {offsets = [0, 0], sizes = [1, 64], strides = [1, 1]} : vector<1x96xf32> to vector<1x64xf32>
    %28 = arith.addf %26, %27 : vector<1x64xf32>
    %29 = arith.negf %28 : vector<1x64xf32>
    %30 = math.exp %29 : vector<1x64xf32>
    %cst_22 = arith.constant 1.000000e+00 : f32
    %31 = vector.broadcast %cst_22 : f32 to vector<1x64xf32>
    %32 = arith.addf %31, %30 : vector<1x64xf32>
    %33 = arith.divf %31, %32 : vector<1x64xf32>
    %34 = vector.extract_strided_slice %33 {offsets = [0, 0], sizes = [1, 32], strides = [1, 1]} : vector<1x64xf32> to vector<1x32xf32>
    %35 = vector.extract_strided_slice %33 {offsets = [0, 32], sizes = [1, 32], strides = [1, 1]} : vector<1x64xf32> to vector<1x32xf32>
    %36 = vector.extract_strided_slice %24 {offsets = [0, 64], sizes = [1, 32], strides = [1, 1]} : vector<1x96xf32> to vector<1x32xf32>
    %37 = vector.extract_strided_slice %25 {offsets = [0, 64], sizes = [1, 32], strides = [1, 1]} : vector<1x96xf32> to vector<1x32xf32>
    %38 = arith.mulf %34, %37 : vector<1x32xf32>
    %39 = arith.addf %36, %38 : vector<1x32xf32>
    %40 = math.tanh %39 : vector<1x32xf32>
    %cst_23 = arith.constant 1.000000e+00 : f32
    %41 = vector.broadcast %cst_23 : f32 to vector<1x32xf32>
    %42 = arith.subf %41, %35 : vector<1x32xf32>
    %43 = arith.mulf %42, %40 : vector<1x32xf32>
    %44 = arith.mulf %35, %18 : vector<1x32xf32>
    %45 = arith.addf %43, %44 : vector<1x32xf32>
    %46 = tpu.concatenate %45, %20 in 1 : vector<1x32xf32>, vector<1x32xf32> -> vector<1x64xf32>
    %cst_24 = arith.constant dense<0.000000e+00> : vector<1x256xf32>
    %47 = tpu.matmul %46, %5, %cst_24 {dimension_numbers = #tpu.dot_dimension_numbers<[1], [0], [0], [1], [0, 0, 1, 1], [], []>} : vector<1x64xf32>, vector<64x256xf32>, vector<1x256xf32> -> vector<1x256xf32>
    %48 = arith.addf %47, %7 : vector<1x256xf32>
    %49 = vector.extract_strided_slice %48 {offsets = [0, 0], sizes = [1, 96], strides = [1, 1]} : vector<1x256xf32> to vector<1x96xf32>
    %50 = vector.extract_strided_slice %48 {offsets = [0, 128], sizes = [1, 96], strides = [1, 1]} : vector<1x256xf32> to vector<1x96xf32>
    %51 = vector.extract_strided_slice %49 {offsets = [0, 0], sizes = [1, 64], strides = [1, 1]} : vector<1x96xf32> to vector<1x64xf32>
    %52 = vector.extract_strided_slice %50 {offsets = [0, 0], sizes = [1, 64], strides = [1, 1]} : vector<1x96xf32> to vector<1x64xf32>
    %53 = arith.addf %51, %52 : vector<1x64xf32>
    %54 = arith.negf %53 : vector<1x64xf32>
    %55 = math.exp %54 : vector<1x64xf32>
    %cst_25 = arith.constant 1.000000e+00 : f32
    %56 = vector.broadcast %cst_25 : f32 to vector<1x64xf32>
    %57 = arith.addf %56, %55 : vector<1x64xf32>
    %58 = arith.divf %56, %57 : vector<1x64xf32>
    %59 = vector.extract_strided_slice %58 {offsets = [0, 0], sizes = [1, 32], strides = [1, 1]} : vector<1x64xf32> to vector<1x32xf32>
    %60 = vector.extract_strided_slice %58 {offsets = [0, 32], sizes = [1, 32], strides = [1, 1]} : vector<1x64xf32> to vector<1x32xf32>
    %61 = vector.extract_strided_slice %49 {offsets = [0, 64], sizes = [1, 32], strides = [1, 1]} : vector<1x96xf32> to vector<1x32xf32>
    %62 = vector.extract_strided_slice %50 {offsets = [0, 64], sizes = [1, 32], strides = [1, 1]} : vector<1x96xf32> to vector<1x32xf32>
    %63 = arith.mulf %59, %62 : vector<1x32xf32>
    %64 = arith.addf %61, %63 : vector<1x32xf32>
    %65 = math.tanh %64 : vector<1x32xf32>
    %cst_26 = arith.constant 1.000000e+00 : f32
    %66 = vector.broadcast %cst_26 : f32 to vector<1x32xf32>
    %67 = arith.subf %66, %60 : vector<1x32xf32>
    %68 = arith.mulf %67, %65 : vector<1x32xf32>
    %69 = arith.mulf %60, %20 : vector<1x32xf32>
    %70 = arith.addf %68, %69 : vector<1x32xf32>
    %cst_27 = arith.constant dense<0.000000e+00> : vector<1x4xf32>
    %71 = tpu.matmul %70, %8, %cst_27 {dimension_numbers = #tpu.dot_dimension_numbers<[1], [0], [0], [1], [0, 0, 1, 1], [], []>} : vector<1x32xf32>, vector<32x4xf32>, vector<1x4xf32> -> vector<1x4xf32>
    %72 = arith.addf %71, %9 : vector<1x4xf32>
    %cst_28 = arith.constant dense<0xFF800000> : vector<1xf32>
    %73 = vector.multi_reduction <maximumf>, %72, %cst_28 [1] : vector<1x4xf32> to vector<1xf32>
    %74 = vector.shape_cast %73 : vector<1xf32> to vector<1x1xf32>
    %75 = vector.broadcast %74 : vector<1x1xf32> to vector<1x4xf32>
    %76 = arith.subf %72, %75 : vector<1x4xf32>
    %77 = math.exp %76 : vector<1x4xf32>
    %cst_29 = arith.constant dense<0.000000e+00> : vector<1xf32>
    %78 = vector.multi_reduction <add>, %77, %cst_29 [1] : vector<1x4xf32> to vector<1xf32>
    %79 = vector.shape_cast %78 : vector<1xf32> to vector<1x1xf32>
    %80 = math.log %79 : vector<1x1xf32>
    %81 = vector.broadcast %80 : vector<1x1xf32> to vector<1x4xf32>
    %82 = arith.subf %76, %81 : vector<1x4xf32>
    %cst_30 = arith.constant 0.000000e+00 : f32
    %83 = vector.broadcast %cst_30 : f32 to vector<1x124xf32>
    %84 = tpu.concatenate %82, %83 in 1 : vector<1x4xf32>, vector<1x124xf32> -> vector<1x128xf32>
    %c0_31 = arith.constant 0 : index
    %c0_32 = arith.constant 0 : index
    %85 = vector.load %arg4[%c0_31, %c0_32] : memref<1x128xf32, #tpu.memory_space<vmem>>, vector<1x128xf32>
    tpu.vector_store %arg4[%c0_31, %c0_32], %84 {strides = array<i32>} : memref<1x128xf32, #tpu.memory_space<vmem>>, vector<1x128xf32>,
    %c0_33 = arith.constant 0 : index
    %c0_34 = arith.constant 0 : index
    %c0_35 = arith.constant 0 : index
    %86 = vector.load %arg5[%c0_33, %c0_34, %c0_35] : memref<2x1x32xf32, #tpu.memory_space<vmem>>, vector<1x1x32xf32>
    %87 = vector.shape_cast %86 : vector<1x1x32xf32> to vector<1x32xf32>
    %88 = vector.shape_cast %45 : vector<1x32xf32> to vector<1x1x32xf32>
    tpu.vector_store %arg5[%c0_33, %c0_34, %c0_35], %88 {strides = array<i32>} : memref<2x1x32xf32, #tpu.memory_space<vmem>>, vector<1x1x32xf32>,
    %c1_36 = arith.constant 1 : index
    %c0_37 = arith.constant 0 : index
    %c0_38 = arith.constant 0 : index
    %89 = vector.load %arg5[%c1_36, %c0_37, %c0_38] : memref<2x1x32xf32, #tpu.memory_space<vmem>>, vector<1x1x32xf32>
    %90 = vector.shape_cast %89 : vector<1x1x32xf32> to vector<1x32xf32>
    %91 = vector.shape_cast %70 : vector<1x32xf32> to vector<1x1x32xf32>
    tpu.vector_store %arg5[%c1_36, %c0_37, %c0_38], %91 {strides = array<i32>} : memref<2x1x32xf32, #tpu.memory_space<vmem>>, vector<1x1x32xf32>,
    return
  }
}

</mosaic_0001>

<llo_original>
// kernel: decoder_rnn_decode.1
$region0: #{decoder_rnn_decode.1}
  #allocation0 [shape = 'u32[]', space=smem, size = 0x4, offset = 0x4, fixed_abs, tag = 'smem constant byte address 0x4 - core index']
  #allocation1 [shape = 'u32[144,128]{1,0:T(1,128)}', space=vmem, size = 0x12000, scoped, tag = 'internal scratch']
  %s0 = inlined_call_operand.vmem [shape: f32[1,4], index: 0, kind: input, shape index: {}]
  %s1 = inlined_call_operand.hbm [shape: f32[200,256], index: 1, kind: input, shape index: {}]
  %s2 = inlined_call_operand.hbm [shape: f32[8,256], index: 2, kind: input, shape index: {}]
  %s3 = inlined_call_operand.vmem [shape: f32[2,1,32], index: 3, kind: input, shape index: {}]
  %s4 = inlined_call_operand.hbm [shape: f32[1,128], index: 4, kind: output, shape index: {0}]
  %s5 = inlined_call_operand.hbm [shape: f32[2,1,32], index: 5, kind: output, shape index: {1}]
  %6 = xla_tuple %s4, %s5
  %s7 = sld [smem:[#allocation0]]
  $region42: #{decoder_rnn_decode.1} parent=0
    _
  %s9 = ssub.s32 1, %s7
  %s10 = scalar_select 0, %s9, %s7
  $region1: #{decoder_rnn_decode.1} parent=0
    #allocation2 [shape = 'u8[204800]{0}', space=vmem, size = 0x32000, scoped, tag = 'input window, operand 1, single buffered']
    #allocation3 [shape = 's32[1]{0}', space=sflag, size = 0x4, scoped, tag = 'scoped memory for decoder_rnn_decode.1']
    #allocation4 [shape = 's32[1]{0}', space=sflag, size = 0x4, scoped, tag = 'scoped memory for decoder_rnn_decode.1']
    #allocation5 [shape = 'u8[8192]{0}', space=vmem, size = 0x2000, scoped, tag = 'input window, operand 2, single buffered']
    #allocation6 [shape = 's32[1]{0}', space=sflag, size = 0x4, scoped, tag = 'scoped memory for decoder_rnn_decode.1']
    #allocation7 [shape = 'u8[512]{0}', space=vmem, size = 0x400, scoped, tag = 'output window, operand 0, single buffered']
    #allocation8 [shape = 'u8[1024]{0}', space=vmem, size = 0x400, scoped, tag = 'output window, operand 1, single buffered']
    #allocation9 [shape = 's32[1]{0}', space=sflag, size = 0x4, scoped, tag = 'scoped memory for decoder_rnn_decode.1']
    %11 = vsyncpa [#allocation3], 0
    %12 = vsyncpa [#allocation6], 0
    %13 = vsyncpa [#allocation4], 0
    %14 = vsyncpa [#allocation9], 0
    // Predicated region
    $region2: #{decoder_rnn_decode.1} parent=1 // pred_check
      _
    $region3: #{decoder_rnn_decode.1} parent=1 // pred_check_branch
      %16 = sbr.rel (0) target = $region5
    $region4: #{decoder_rnn_decode.1} parent=1 // pred_region
      _
    $region5: #{decoder_rnn_decode.1} parent=1 // pred_fallthru
      _
    // Predicated region
    $region6: #{decoder_rnn_decode.1} parent=1 // pred_check
      _
    $region7: #{decoder_rnn_decode.1} parent=1 // pred_check_branch
      %18 = sbr.rel (0) target = $region9
    $region8: #{decoder_rnn_decode.1} parent=1 // pred_region
      %s20 = ssub.s32 6400, 6400
      %21 = vsyncadd [#allocation3], %s20
      %s22 = sshll.u32 [#allocation2], 4
      %s23 = int_to_ptr.vmem [resolvable:$true] %s22
      %28 = dma.hbm_to_vmem [thread:$0]  %s1, 6400, %s23, [#allocation3], 256, 256, 16
    $region9: #{decoder_rnn_decode.1} parent=1 // pred_fallthru
      _
    // Predicated region
    $region10: #{decoder_rnn_decode.1} parent=1 // pred_check
      _
    $region11: #{decoder_rnn_decode.1} parent=1 // pred_check_branch
      %30 = sbr.rel (0) target = $region13
    $region12: #{decoder_rnn_decode.1} parent=1 // pred_region
      %s32 = ssub.s32 256, 256
      %33 = vsyncadd [#allocation6], %s32
      %s35 = sshll.u32 [#allocation5], 4
      %s36 = int_to_ptr.vmem [resolvable:$true] %s35
      %38 = dma.hbm_to_vmem [thread:$0]  %s2, 256, %s36, [#allocation6]
    $region13: #{decoder_rnn_decode.1} parent=1 // pred_fallthru
      _
    // Predicated region
    $region14: #{decoder_rnn_decode.1} parent=1 // pred_check
      _
    $region15: #{decoder_rnn_decode.1} parent=1 // pred_check_branch
      %40 = sbr.rel (0) target = $region17
    $region16: #{decoder_rnn_decode.1} parent=1 // pred_region
      _
    $region17: #{decoder_rnn_decode.1} parent=1 // pred_fallthru
      _
    // Predicated region
    $region18: #{decoder_rnn_decode.1} parent=1 // pred_check
      _
    $region19: #{decoder_rnn_decode.1} parent=1 // pred_check_branch
      %42 = sbr.rel (0) target = $region21
    $region20: #{decoder_rnn_decode.1} parent=1 // pred_region
      %43 = dma.done [#allocation3], 6400
    $region21: #{decoder_rnn_decode.1} parent=1 // pred_fallthru
      _
    // Predicated region
    $region22: #{decoder_rnn_decode.1} parent=1 // pred_check
      _
    $region23: #{decoder_rnn_decode.1} parent=1 // pred_check_branch
      %45 = sbr.rel (0) target = $region25
    $region24: #{decoder_rnn_decode.1} parent=1 // pred_region
      %46 = dma.done [#allocation6], 256
    $region25: #{decoder_rnn_decode.1} parent=1 // pred_fallthru
      _
    %v47 = vld [vmem:[#allocation2] sm:$0xf]
    %v48 = vld [vmem:[#allocation2 + $0x10] sm:$0xff]
    %v49 = vld [vmem:[#allocation2 + $0x20] sm:$0xff]
    %v50 = vld [vmem:[#allocation2 + $0x30] sm:$0xff]
    %v51 = vld [vmem:[#allocation2 + $0x40] sm:$0xff]
    %v52 = vld [vmem:[#allocation5] ss:$0 sm:$0xff]
    %v53 = vld [vmem:[#allocation5 + $0x1] ss:$0 sm:$0xff]
    %v54 = vld [vmem:[#allocation2 + $0x50] sm:$0xff]
    %v55 = vld [vmem:[#allocation2 + $0x58] sm:$0xff]
    %v56 = vld [vmem:[#allocation2 + $0x60] sm:$0xff]
    %v57 = vld [vmem:[#allocation2 + $0x68] sm:$0xff]
    %v58 = vld [vmem:[#allocation2 + $0x70] sm:$0xff]
    %v59 = vld [vmem:[#allocation2 + $0x78] sm:$0xff]
    %v60 = vld [vmem:[#allocation2 + $0x80] sm:$0xff]
    %v61 = vld [vmem:[#allocation2 + $0x88] sm:$0xff]
    %v62 = vld [vmem:[#allocation2 + $0x90] sm:$0xff]
    %v63 = vld [vmem:[#allocation2 + $0x98] sm:$0xff]
    %v64 = vld [vmem:[#allocation2 + $0xa0] sm:$0xff]
    %v65 = vld [vmem:[#allocation2 + $0xa8] sm:$0xff]
    %v66 = vld [vmem:[#allocation2 + $0xb0] sm:$0xff]
    %v67 = vld [vmem:[#allocation2 + $0xb8] sm:$0xff]
    %v68 = vld [vmem:[#allocation2 + $0xc0] sm:$0xff]
    %v69 = vld [vmem:[#allocation2 + $0xc8] sm:$0xff]
    %v70 = vld [vmem:[#allocation2 + $0xd0] sm:$0xff]
    %v71 = vld [vmem:[#allocation2 + $0xd8] sm:$0xff]
    %v72 = vld [vmem:[#allocation2 + $0xe0] sm:$0xff]
    %v73 = vld [vmem:[#allocation2 + $0xe8] sm:$0xff]
    %v74 = vld [vmem:[#allocation2 + $0xf0] sm:$0xff]
    %v75 = vld [vmem:[#allocation2 + $0xf8] sm:$0xff]
    %v76 = vld [vmem:[#allocation2 + $0x100] sm:$0xff]
    %v77 = vld [vmem:[#allocation2 + $0x108] sm:$0xff]
    %v78 = vld [vmem:[#allocation2 + $0x110] sm:$0xff]
    %v79 = vld [vmem:[#allocation2 + $0x118] sm:$0xff]
    %v80 = vld [vmem:[#allocation2 + $0x120] sm:$0xff]
    %v81 = vld [vmem:[#allocation2 + $0x128] sm:$0xff]
    %v82 = vld [vmem:[#allocation2 + $0x130] sm:$0xff]
    %v83 = vld [vmem:[#allocation2 + $0x138] sm:$0xff]
    %v84 = vld [vmem:[#allocation2 + $0x140] sm:$0xff]
    %v85 = vld [vmem:[#allocation2 + $0x148] sm:$0xff]
    %s86 = scalar_lea.vmem [#allocation5], 2
    %v87 = vld [vmem:[%s86] ss:$8 sm:$0x3]
    %s88 = scalar_lea.vmem [#allocation5], 3
    %v89 = vld [vmem:[%s88] ss:$8 sm:$0x3]
    %v90 = vld [vmem:[#allocation2 + $0x150] sm:$0xff]
    %v91 = vld [vmem:[#allocation2 + $0x160] sm:$0xff]
    %v92 = vld [vmem:[#allocation2 + $0x170] sm:$0xff]
    %v93 = vld [vmem:[#allocation2 + $0x180] sm:$0xff]
    %v94 = vld [vmem:[#allocation5 + $0x4] ss:$0 sm:$0xff]
    %v95 = vld [vmem:[%s0] sm:$0x1]
    %vm96 = vcmask 31744
    %v98 = vsel %vm96, %v95, 0
    %vm100 = vcmask 1043456
    %v102 = vsel %vm100, %v47, 0
    %104 = vmatprep.subr.mxu0 0.0
    %105 = vmatpush1.msra.mxu0 0.0
    %106 = vmatprep.subr.mxu0 0.0
    %107 = vmatpush1.msra.mxu0 0.0
    %108 = vmatprep.subr.mxu0 0.0
    %109 = vmatpush1.msra.mxu0 0.0
    %110 = vmatprep.subr.mxu0 0.0
    %111 = vmatpush1.msra.mxu0 0.0
    %112 = vmatprep.subr.mxu0 0.0
    %113 = vmatpush1.msra.mxu0 0.0
    %114 = vmatprep.subr.mxu0 0.0
    %115 = vmatpush1.msra.mxu0 0.0
    %116 = vmatprep.subr.mxu0 0.0
    %117 = vmatpush1.msra.mxu0 0.0
    %118 = vmatprep.subr.mxu0 0.0
    %119 = vmatpush1.msra.mxu0 0.0
    %120 = vmatprep.subr.mxu0 0.0
    %121 = vmatpush1.msra.mxu0 0.0
    %122 = vmatprep.subr.mxu0 0.0
    %123 = vmatpush1.msra.mxu0 0.0
    %124 = vmatprep.subr.mxu0 0.0
    %125 = vmatpush1.msra.mxu0 0.0
    %126 = vmatprep.subr.mxu0 0.0
    %127 = vmatpush1.msra.mxu0 0.0
    %128 = vmatprep.subr.mxu0 0.0
    %129 = vmatpush1.msra.mxu0 0.0
    %130 = vmatprep.subr.mxu0 0.0
    %131 = vmatpush1.msra.mxu0 0.0
    %132 = vmatprep.subr.mxu0 0.0
    %133 = vmatpush1.msra.mxu0 0.0
    %134 = vmatprep.subr.mxu0 0.0
    %135 = vmatpush1.msra.mxu0 %v102
    %136 = vmatprep.subr.mxu0 0.0
    %137 = vmatpush2.msra.mxu0 0.0
    %138 = vmatprep.subr.mxu0 0.0
    %139 = vmatpush2.msra.mxu0 0.0
    %140 = vmatprep.subr.mxu0 0.0
    %141 = vmatpush2.msra.mxu0 0.0
    %142 = vmatprep.subr.mxu0 0.0
    %143 = vmatpush2.msra.mxu0 0.0
    %144 = vmatprep.subr.mxu0 0.0
    %145 = vmatpush2.msra.mxu0 0.0
    %146 = vmatprep.subr.mxu0 0.0
    %147 = vmatpush2.msra.mxu0 0.0
    %148 = vmatprep.subr.mxu0 0.0
    %149 = vmatpush2.msra.mxu0 0.0
    %150 = vmatprep.subr.mxu0 0.0
    %151 = vmatpush2.msra.mxu0 0.0
    %152 = vmatprep.subr.mxu0 0.0
    %153 = vmatpush2.msra.mxu0 0.0
    %154 = vmatprep.subr.mxu0 0.0
    %155 = vmatpush2.msra.mxu0 0.0
    %156 = vmatprep.subr.mxu0 0.0
    %157 = vmatpush2.msra.mxu0 0.0
    %158 = vmatprep.subr.mxu0 0.0
    %159 = vmatpush2.msra.mxu0 0.0
    %160 = vmatprep.subr.mxu0 0.0
    %161 = vmatpush2.msra.mxu0 0.0
    %162 = vmatprep.subr.mxu0 0.0
    %163 = vmatpush2.msra.mxu0 0.0
    %164 = vmatprep.subr.mxu0 0.0
    %165 = vmatpush2.msra.mxu0 0.0
    %166 = vmatprep.subr.mxu0 0.0
    %167 = vmatpush2.msra.mxu0 0.0
    %168 = vmatprep.mubr.f32.mxu0 0.0
    %169 = vmatmul.mubr.f32.gmra.mxu0 %v98
    %v170 = vpop.f32.mrf.mxu0
    %v171 = vadd.f32 %v52, %v170
    %v172 = vpop.f32.mrf.mxu0
    %173 = vdwg.mxu0
    %v174 = vmax.f32 %v171, 0.0
    %vm175 = vcmask 261120
    %v177 = vsel %vm175, %v174, 0
    %179 = vmatprep.subr.mxu0 0.0
    %180 = vmatpush1.msra.mxu0 0.0
    %181 = vmatprep.subr.mxu0 0.0
    %182 = vmatpush1.msra.mxu0 0.0
    %183 = vmatprep.subr.mxu0 0.0
    %184 = vmatpush1.msra.mxu0 0.0
    %185 = vmatprep.subr.mxu0 0.0
    %186 = vmatpush1.msra.mxu0 0.0
    %187 = vmatprep.subr.mxu0 0.0
    %188 = vmatpush1.msra.mxu0 0.0
    %189 = vmatprep.subr.mxu0 0.0
    %190 = vmatpush1.msra.mxu0 0.0
    %191 = vmatprep.subr.mxu0 0.0
    %192 = vmatpush1.msra.mxu0 0.0
    %193 = vmatprep.subr.mxu0 0.0
    %194 = vmatpush1.msra.mxu0 0.0
    %195 = vmatprep.subr.mxu0 0.0
    %196 = vmatpush1.msra.mxu0 0.0
    %197 = vmatprep.subr.mxu0 0.0
    %198 = vmatpush1.msra.mxu0 0.0
    %199 = vmatprep.subr.mxu0 0.0
    %200 = vmatpush1.msra.mxu0 0.0
    %201 = vmatprep.subr.mxu0 0.0
    %202 = vmatpush1.msra.mxu0 0.0
    %203 = vmatprep.subr.mxu0 0.0
    %204 = vmatpush1.msra.mxu0 %v51
    %205 = vmatprep.subr.mxu0 0.0
    %206 = vmatpush1.msra.mxu0 %v50
    %207 = vmatprep.subr.mxu0 0.0
    %208 = vmatpush1.msra.mxu0 %v49
    %209 = vmatprep.subr.mxu0 0.0
    %210 = vmatpush1.msra.mxu0 %v48
    %211 = vmatprep.subr.mxu0 0.0
    %212 = vmatpush2.msra.mxu0 0.0
    %213 = vmatprep.subr.mxu0 0.0
    %214 = vmatpush2.msra.mxu0 0.0
    %215 = vmatprep.subr.mxu0 0.0
    %216 = vmatpush2.msra.mxu0 0.0
    %217 = vmatprep.subr.mxu0 0.0
    %218 = vmatpush2.msra.mxu0 0.0
    %219 = vmatprep.subr.mxu0 0.0
    %220 = vmatpush2.msra.mxu0 0.0
    %221 = vmatprep.subr.mxu0 0.0
    %222 = vmatpush2.msra.mxu0 0.0
    %223 = vmatprep.subr.mxu0 0.0
    %224 = vmatpush2.msra.mxu0 0.0
    %225 = vmatprep.subr.mxu0 0.0
    %226 = vmatpush2.msra.mxu0 0.0
    %227 = vmatprep.subr.mxu0 0.0
    %228 = vmatpush2.msra.mxu0 0.0
    %229 = vmatprep.subr.mxu0 0.0
    %230 = vmatpush2.msra.mxu0 0.0
    %231 = vmatprep.subr.mxu0 0.0
    %232 = vmatpush2.msra.mxu0 0.0
    %233 = vmatprep.subr.mxu0 0.0
    %234 = vmatpush2.msra.mxu0 0.0
    %235 = vmatprep.subr.mxu0 0.0
    %236 = vmatpush2.msra.mxu0 0.0
    %237 = vmatprep.subr.mxu0 0.0
    %238 = vmatpush2.msra.mxu0 0.0
    %239 = vmatprep.subr.mxu0 0.0
    %240 = vmatpush2.msra.mxu0 0.0
    %241 = vmatprep.subr.mxu0 0.0
    %242 = vmatpush2.msra.mxu0 0.0
    %243 = vmatprep.mubr.f32.mxu0 0.0
    %244 = vmatmul.mubr.f32.gmra.mxu0 %v177
    %v245 = vpop.f32.mrf.mxu0
    %v246 = vadd.f32 %v53, %v245
    %v247 = vpop.f32.mrf.mxu0
    %248 = vdwg.mxu0
    %v249 = vld [vmem:[%s3] sm:$0x1]
    %s250 = scalar_lea.vmem %s3, 1
    %v251 = vld [vmem:[%s250] sm:$0x1]
    %v253 = vlaneseq
    %v254 = vshrl.u32 %v253, 7
    %v255 = vsub.s32 0, %v254
    %v256 = vrot.slane %v249, %v255
    %257 = vrot.lane.b32.xlu0 %v256, 32
    %v258 = vpop.permute.xlu0 %257
    %v260 = vsel %vm175, %v246, %v258
    %v262 = vlaneseq
    %v263 = vshrl.u32 %v262, 7
    %v264 = vsub.s32 0, %v263
    %v265 = vrot.slane %v87, %v264
    %v266 = vlaneseq
    %v267 = vshrl.u32 %v266, 7
    %v268 = vsub.s32 1, %v267
    %v269 = vrot.slane %v87, %v268
    %vm272 = vcmask 523264
    %v274 = vsel %vm272, %v260, 0
    %276 = vmatprep.subr.mxu0 0.0
    %277 = vmatpush1.msra.mxu0 0.0
    %278 = vmatprep.subr.mxu0 0.0
    %279 = vmatpush1.msra.mxu0 0.0
    %280 = vmatprep.subr.mxu0 0.0
    %281 = vmatpush1.msra.mxu0 0.0
    %282 = vmatprep.subr.mxu0 0.0
    %283 = vmatpush1.msra.mxu0 0.0
    %284 = vmatprep.subr.mxu0 0.0
    %285 = vmatpush1.msra.mxu0 0.0
    %286 = vmatprep.subr.mxu0 0.0
    %287 = vmatpush1.msra.mxu0 0.0
    %288 = vmatprep.subr.mxu0 0.0
    %289 = vmatpush1.msra.mxu0 0.0
    %290 = vmatprep.subr.mxu0 0.0
    %291 = vmatpush1.msra.mxu0 0.0
    %292 = vmatprep.subr.mxu0 %v69
    %293 = vmatpush1.msra.mxu0 %v68
    %294 = vmatprep.subr.mxu0 %v67
    %295 = vmatpush1.msra.mxu0 %v66
    %296 = vmatprep.subr.mxu0 %v65
    %297 = vmatpush1.msra.mxu0 %v64
    %298 = vmatprep.subr.mxu0 %v63
    %299 = vmatpush1.msra.mxu0 %v62
    %300 = vmatprep.subr.mxu0 %v61
    %301 = vmatpush1.msra.mxu0 %v60
    %302 = vmatprep.subr.mxu0 %v59
    %303 = vmatpush1.msra.mxu0 %v58
    %304 = vmatprep.subr.mxu0 %v57
    %305 = vmatpush1.msra.mxu0 %v56
    %306 = vmatprep.subr.mxu0 %v55
    %307 = vmatpush1.msra.mxu0 %v54
    %308 = vmatprep.subr.mxu0 0.0
    %309 = vmatpush2.msra.mxu0 0.0
    %310 = vmatprep.subr.mxu0 0.0
    %311 = vmatpush2.msra.mxu0 0.0
    %312 = vmatprep.subr.mxu0 0.0
    %313 = vmatpush2.msra.mxu0 0.0
    %314 = vmatprep.subr.mxu0 0.0
    %315 = vmatpush2.msra.mxu0 0.0
    %316 = vmatprep.subr.mxu0 0.0
    %317 = vmatpush2.msra.mxu0 0.0
    %318 = vmatprep.subr.mxu0 0.0
    %319 = vmatpush2.msra.mxu0 0.0
    %320 = vmatprep.subr.mxu0 0.0
    %321 = vmatpush2.msra.mxu0 0.0
    %322 = vmatprep.subr.mxu0 0.0
    %323 = vmatpush2.msra.mxu0 0.0
    %324 = vmatprep.subr.mxu0 0.0
    %325 = vmatpush2.msra.mxu0 0.0
    %326 = vmatprep.subr.mxu0 0.0
    %327 = vmatpush2.msra.mxu0 0.0
    %328 = vmatprep.subr.mxu0 0.0
    %329 = vmatpush2.msra.mxu0 0.0
    %330 = vmatprep.subr.mxu0 0.0
    %331 = vmatpush2.msra.mxu0 0.0
    %332 = vmatprep.subr.mxu0 0.0
    %333 = vmatpush2.msra.mxu0 0.0
    %334 = vmatprep.subr.mxu0 0.0
    %335 = vmatpush2.msra.mxu0 0.0
    %336 = vmatprep.subr.mxu0 0.0
    %337 = vmatpush2.msra.mxu0 0.0
    %338 = vmatprep.subr.mxu0 0.0
    %339 = vmatpush2.msra.mxu0 0.0
    %340 = vmatprep.mubr.f32.mxu0 0.0
    %341 = vmatmul.mubr.f32.gmra.mxu0 %v274
    %v342 = vpop.f32.mrf.mxu0
    %v343 = vadd.f32 %v265, %v342
    %v344 = vpop.f32.mrf.mxu0
    %v345 = vadd.f32 %v269, %v344
    %346 = vdwg.mxu0
    %v347 = vadd.f32 %v343, %v345
    %v348 = vxor.u32 %v347, 2147483648
    %v349 = vmul.f32 %v348, 1.442695
    %v350 = vpow.pop %v349
    %v351 = vadd.f32 %v350, 1.0
    %v352 = vrcp.pop %v351
    %v353 = vmul.f32 1.0, %v352
    %355 = vrot.lane.b32.xlu0 %v345, 64
    %v356 = vpop.permute.xlu0 %355
    %v358 = vmul.f32 %v353, %v356
    %360 = vrot.lane.b32.xlu0 %v358, 64
    %v361 = vpop.permute.xlu0 %360
    %v363 = vadd.f32 %v343, %v361
    %v364 = vtanh.pop %v363
    %v365 = vsub.f32 1.0, %v353
    %367 = vrot.lane.b32.xlu0 %v364, 96
    %v368 = vpop.permute.xlu0 %367
    %v370 = vmul.f32 %v365, %v368
    %v371 = vmul.f32 %v353, %v258
    %v372 = vadd.f32 %v370, %v371
    %374 = vrot.lane.b32.xlu0 %v372, 96
    %v375 = vpop.permute.xlu0 %374
    %v378 = vlaneseq
    %v379 = vshrl.u32 %v378, 7
    %v380 = vsub.s32 0, %v379
    %v381 = vrot.slane %v251, %v380
    %382 = vrot.lane.b32.xlu0 %v381, 32
    %v383 = vpop.permute.xlu0 %382
    %v385 = vsel %vm175, %v375, %v383
    %v387 = vlaneseq
    %v388 = vshrl.u32 %v387, 7
    %v389 = vsub.s32 0, %v388
    %v390 = vrot.slane %v89, %v389
    %v391 = vlaneseq
    %v392 = vshrl.u32 %v391, 7
    %v393 = vsub.s32 1, %v392
    %v394 = vrot.slane %v89, %v393
    %v398 = vsel %vm272, %v385, 0
    %400 = vmatprep.subr.mxu0 0.0
    %401 = vmatpush1.msra.mxu0 0.0
    %402 = vmatprep.subr.mxu0 0.0
    %403 = vmatpush1.msra.mxu0 0.0
    %404 = vmatprep.subr.mxu0 0.0
    %405 = vmatpush1.msra.mxu0 0.0
    %406 = vmatprep.subr.mxu0 0.0
    %407 = vmatpush1.msra.mxu0 0.0
    %408 = vmatprep.subr.mxu0 0.0
    %409 = vmatpush1.msra.mxu0 0.0
    %410 = vmatprep.subr.mxu0 0.0
    %411 = vmatpush1.msra.mxu0 0.0
    %412 = vmatprep.subr.mxu0 0.0
    %413 = vmatpush1.msra.mxu0 0.0
    %414 = vmatprep.subr.mxu0 0.0
    %415 = vmatpush1.msra.mxu0 0.0
    %416 = vmatprep.subr.mxu0 %v85
    %417 = vmatpush1.msra.mxu0 %v84
    %418 = vmatprep.subr.mxu0 %v83
    %419 = vmatpush1.msra.mxu0 %v82
    %420 = vmatprep.subr.mxu0 %v81
    %421 = vmatpush1.msra.mxu0 %v80
    %422 = vmatprep.subr.mxu0 %v79
    %423 = vmatpush1.msra.mxu0 %v78
    %424 = vmatprep.subr.mxu0 %v77
    %425 = vmatpush1.msra.mxu0 %v76
    %426 = vmatprep.subr.mxu0 %v75
    %427 = vmatpush1.msra.mxu0 %v74
    %428 = vmatprep.subr.mxu0 %v73
    %429 = vmatpush1.msra.mxu0 %v72
    %430 = vmatprep.subr.mxu0 %v71
    %431 = vmatpush1.msra.mxu0 %v70
    %432 = vmatprep.subr.mxu0 0.0
    %433 = vmatpush2.msra.mxu0 0.0
    %434 = vmatprep.subr.mxu0 0.0
    %435 = vmatpush2.msra.mxu0 0.0
    %436 = vmatprep.subr.mxu0 0.0
    %437 = vmatpush2.msra.mxu0 0.0
    %438 = vmatprep.subr.mxu0 0.0
    %439 = vmatpush2.msra.mxu0 0.0
    %440 = vmatprep.subr.mxu0 0.0
    %441 = vmatpush2.msra.mxu0 0.0
    %442 = vmatprep.subr.mxu0 0.0
    %443 = vmatpush2.msra.mxu0 0.0
    %444 = vmatprep.subr.mxu0 0.0
    %445 = vmatpush2.msra.mxu0 0.0
    %446 = vmatprep.subr.mxu0 0.0
    %447 = vmatpush2.msra.mxu0 0.0
    %448 = vmatprep.subr.mxu0 0.0
    %449 = vmatpush2.msra.mxu0 0.0
    %450 = vmatprep.subr.mxu0 0.0
    %451 = vmatpush2.msra.mxu0 0.0
    %452 = vmatprep.subr.mxu0 0.0
    %453 = vmatpush2.msra.mxu0 0.0
    %454 = vmatprep.subr.mxu0 0.0
    %455 = vmatpush2.msra.mxu0 0.0
    %456 = vmatprep.subr.mxu0 0.0
    %457 = vmatpush2.msra.mxu0 0.0
    %458 = vmatprep.subr.mxu0 0.0
    %459 = vmatpush2.msra.mxu0 0.0
    %460 = vmatprep.subr.mxu0 0.0
    %461 = vmatpush2.msra.mxu0 0.0
    %462 = vmatprep.subr.mxu0 0.0
    %463 = vmatpush2.msra.mxu0 0.0
    %464 = vmatprep.mubr.f32.mxu0 0.0
    %465 = vmatmul.mubr.f32.gmra.mxu0 %v398
    %v466 = vpop.f32.mrf.mxu0
    %v467 = vadd.f32 %v390, %v466
    %v468 = vpop.f32.mrf.mxu0
    %v469 = vadd.f32 %v394, %v468
    %470 = vdwg.mxu0
    %v471 = vadd.f32 %v467, %v469
    %v472 = vxor.u32 %v471, 2147483648
    %v473 = vmul.f32 %v472, 1.442695
    %v474 = vpow.pop %v473
    %v475 = vadd.f32 %v474, 1.0
    %v476 = vrcp.pop %v475
    %v477 = vmul.f32 1.0, %v476
    %479 = vrot.lane.b32.xlu0 %v469, 64
    %v480 = vpop.permute.xlu0 %479
    %v482 = vmul.f32 %v477, %v480
    %484 = vrot.lane.b32.xlu0 %v482, 64
    %v485 = vpop.permute.xlu0 %484
    %v487 = vadd.f32 %v467, %v485
    %v488 = vtanh.pop %v487
    %v489 = vsub.f32 1.0, %v477
    %491 = vrot.lane.b32.xlu0 %v488, 96
    %v492 = vpop.permute.xlu0 %491
    %v494 = vmul.f32 %v489, %v492
    %v495 = vmul.f32 %v477, %v383
    %v496 = vadd.f32 %v494, %v495
    %498 = vrot.lane.b32.xlu0 %v496, 96
    %v499 = vpop.permute.xlu0 %498
    %v500 = vsel %vm175, %v499, 0
    %502 = vmatprep.subr.mxu0 0.0
    %503 = vmatpush1.msra.mxu0 0.0
    %504 = vmatprep.subr.mxu0 0.0
    %505 = vmatpush1.msra.mxu0 0.0
    %506 = vmatprep.subr.mxu0 0.0
    %507 = vmatpush1.msra.mxu0 0.0
    %508 = vmatprep.subr.mxu0 0.0
    %509 = vmatpush1.msra.mxu0 0.0
    %510 = vmatprep.subr.mxu0 0.0
    %511 = vmatpush1.msra.mxu0 0.0
    %512 = vmatprep.subr.mxu0 0.0
    %513 = vmatpush1.msra.mxu0 0.0
    %514 = vmatprep.subr.mxu0 0.0
    %515 = vmatpush1.msra.mxu0 0.0
    %516 = vmatprep.subr.mxu0 0.0
    %517 = vmatpush1.msra.mxu0 0.0
    %518 = vmatprep.subr.mxu0 0.0
    %519 = vmatpush1.msra.mxu0 0.0
    %520 = vmatprep.subr.mxu0 0.0
    %521 = vmatpush1.msra.mxu0 0.0
    %522 = vmatprep.subr.mxu0 0.0
    %523 = vmatpush1.msra.mxu0 0.0
    %524 = vmatprep.subr.mxu0 0.0
    %525 = vmatpush1.msra.mxu0 0.0
    %526 = vmatprep.subr.mxu0 0.0
    %527 = vmatpush1.msra.mxu0 %v93
    %528 = vmatprep.subr.mxu0 0.0
    %529 = vmatpush1.msra.mxu0 %v92
    %530 = vmatprep.subr.mxu0 0.0
    %531 = vmatpush1.msra.mxu0 %v91
    %532 = vmatprep.subr.mxu0 0.0
    %533 = vmatpush1.msra.mxu0 %v90
    %534 = vmatprep.subr.mxu0 0.0
    %535 = vmatpush2.msra.mxu0 0.0
    %536 = vmatprep.subr.mxu0 0.0
    %537 = vmatpush2.msra.mxu0 0.0
    %538 = vmatprep.subr.mxu0 0.0
    %539 = vmatpush2.msra.mxu0 0.0
    %540 = vmatprep.subr.mxu0 0.0
    %541 = vmatpush2.msra.mxu0 0.0
    %542 = vmatprep.subr.mxu0 0.0
    %543 = vmatpush2.msra.mxu0 0.0
    %544 = vmatprep.subr.mxu0 0.0
    %545 = vmatpush2.msra.mxu0 0.0
    %546 = vmatprep.subr.mxu0 0.0
    %547 = vmatpush2.msra.mxu0 0.0
    %548 = vmatprep.subr.mxu0 0.0
    %549 = vmatpush2.msra.mxu0 0.0
    %550 = vmatprep.subr.mxu0 0.0
    %551 = vmatpush2.msra.mxu0 0.0
    %552 = vmatprep.subr.mxu0 0.0
    %553 = vmatpush2.msra.mxu0 0.0
    %554 = vmatprep.subr.mxu0 0.0
    %555 = vmatpush2.msra.mxu0 0.0
    %556 = vmatprep.subr.mxu0 0.0
    %557 = vmatpush2.msra.mxu0 0.0
    %558 = vmatprep.subr.mxu0 0.0
    %559 = vmatpush2.msra.mxu0 0.0
    %560 = vmatprep.subr.mxu0 0.0
    %561 = vmatpush2.msra.mxu0 0.0
    %562 = vmatprep.subr.mxu0 0.0
    %563 = vmatpush2.msra.mxu0 0.0
    %564 = vmatprep.subr.mxu0 0.0
    %565 = vmatpush2.msra.mxu0 0.0
    %566 = vmatprep.mubr.f32.mxu0 0.0
    %567 = vmatmul.mubr.f32.gmra.mxu0 %v500
    %v568 = vpop.f32.mrf.mxu0
    %v569 = vadd.f32 %v94, %v568
    %v570 = vpop.f32.mrf.mxu0
    %571 = vdwg.mxu0
    %vm572 = vcmask 24576
    %v573 = vsel %vm572, %v569, -inf
    %574 = vmax.xlane.f32.xlu0 %v573
    %v575 = vpop.xlane.xlu0 %574
    %v576 = vsub.f32 %v569, %v575
    %v577 = vmul.f32 %v576, 1.442695
    %v578 = vpow.pop %v577
    %v579 = vsel %vm572, %v578, 0.0
    %580 = vadd.xlane.f32.xlu0 %v579
    %v581 = vpop.xlane.xlu0 %580
    %v582 = vlog2.pop %v581
    %v583 = vmul.f32 %v582, 0.6931472
    %v584 = vsub.f32 %v576, %v583
    %v585 = vsel %vm96, %v584, 0.0
    %586 = vst [vmem:[#allocation7] sm:$0x1] %v585
    %vm587 = vcmask 253952
    %588 = vst.msk [vmem:[#allocation8] sm:$0x1] %vm587, %v375
    %s590 = scalar_lea.vmem [#allocation8], 1
    %591 = vst.msk [vmem:[%s590] sm:$0x1] %vm587, %v499
    // Predicated region
    $region26: #{decoder_rnn_decode.1} parent=1 // pred_check
      _
    $region27: #{decoder_rnn_decode.1} parent=1 // pred_check_branch
      %593 = sbr.rel (0) target = $region29
    $region28: #{decoder_rnn_decode.1} parent=1 // pred_region
      %s595 = ssub.s32 16, 16
      %596 = vsyncadd [#allocation4], %s595
      %s598 = sshll.u32 [#allocation7], 4
      %s599 = int_to_ptr.vmem [resolvable:$true] %s598
      %601 = dma.vmem_to_hbm [thread:$0]  %s599, 16, %s4, [#allocation4]
    $region29: #{decoder_rnn_decode.1} parent=1 // pred_fallthru
      _
    // Predicated region
    $region30: #{decoder_rnn_decode.1} parent=1 // pred_check
      _
    $region31: #{decoder_rnn_decode.1} parent=1 // pred_check_branch
      %603 = sbr.rel (0) target = $region33
    $region32: #{decoder_rnn_decode.1} parent=1 // pred_region
      %s605 = ssub.s32 32, 32
      %606 = vsyncadd [#allocation9], %s605
      %s607 = sshll.u32 [#allocation8], 4
      %s608 = int_to_ptr.vmem [resolvable:$true] %s607
      %613 = dma.vmem_to_hbm [thread:$0]  %s608, 32, %s5, [#allocation9], 16, 16, 1
    $region33: #{decoder_rnn_decode.1} parent=1 // pred_fallthru
      _
    // Predicated region
    $region34: #{decoder_rnn_decode.1} parent=1 // pred_check
      _
    $region35: #{decoder_rnn_decode.1} parent=1 // pred_check_branch
      %615 = sbr.rel (0) target = $region37
    $region36: #{decoder_rnn_decode.1} parent=1 // pred_region
      %616 = dma.done [#allocation4], 16
    $region37: #{decoder_rnn_decode.1} parent=1 // pred_fallthru
      _
    // Predicated region
    $region38: #{decoder_rnn_decode.1} parent=1 // pred_check
      _
    $region39: #{decoder_rnn_decode.1} parent=1 // pred_check_branch
      %618 = sbr.rel (0) target = $region41
    $region40: #{decoder_rnn_decode.1} parent=1 // pred_region
      %619 = dma.done [#allocation9], 32
    $region41: #{decoder_rnn_decode.1} parent=1 // pred_fallthru
      _
    %620 = vsyncpa [#allocation3], 1
    %621 = vsyncpa [#allocation6], 1
    %622 = vsyncpa [#allocation4], 1
    %623 = vsyncpa [#allocation9], 1

</llo_original>
